<compile_context>
chip_gen: v6e
topology: v6e:2x2x1
jax: 0.10.0
libtpu: 0.0.40
codegen_flags: <defaults>
</compile_context>

<pallas_src>
import jax
import jax.numpy as jnp
from jax.experimental import pallas as pl
from jax.experimental.pallas import tpu as pltpu

NUM_SCENES = 7


def _make_fused_kernel(layer_dims, num_scenes):
    """layer_dims: tuple of (in_dim, out_dim) per layer (static)."""
    n_layers = len(layer_dims)

    def kernel(onehot_ref, x_ref, *refs):
        wb_refs = refs[:2 * n_layers]
        o_ref = refs[2 * n_layers]

        oh = onehot_ref[...]                 # (B, NS) f32 one-hot scene selector
        h = x_ref[...]                       # (B, In) f32

        for li, (_, dout) in enumerate(layer_dims):
            w_ref = wb_refs[2 * li]          # (din, NS*dout)  scene-major columns
            b_ref = wb_refs[2 * li + 1]      # (1,   NS*dout)

            # One lane-dense MXU push covering all 7 scenes, bias folded in.
            y_all = jnp.dot(h, w_ref[...],
                            preferred_element_type=jnp.float32)   # (B, NS*dout)
            y_all = y_all + b_ref[...]

            # Per-row scene selection: sum_s onehot[:, s] * block_s.
            y = oh[:, 0:1] * y_all[:, 0:dout]
            for s in range(1, num_scenes):
                y = y + oh[:, s:s + 1] * y_all[:, s * dout:(s + 1) * dout]

            if li < n_layers - 1:            # last layer has drop=True -> no ReLU
                y = jnp.maximum(y, 0.0)
            # TODO(synk): nn.Dropout treated as identity (eval mode).
            h = y

        o_ref[...] = h.astype(o_ref.dtype)

    return kernel


def mdnn_forward(x, scene, params):
    """params: list of (W (NS,In,Out), b (NS,Out)); ReLU on all but last layer."""
    B = x.shape[0]
    x2 = x.reshape(B, -1).astype(jnp.float32)        # autoMatch flatten
    onehot = jax.nn.one_hot(scene, NUM_SCENES, dtype=jnp.float32)   # (B, NS)

    layer_dims = []
    args = [onehot, x2]
    in_specs = [
        pl.BlockSpec((B, NUM_SCENES), lambda i: (0, 0)),     # one-hot selector
        pl.BlockSpec((B, x2.shape[1]), lambda i: (0, 0)),    # activations
    ]
    for (W, b) in params:
        ns, din, dout = W.shape
        layer_dims.append((din, dout))
        # Scene-major column layout: column s*dout + o  <->  W[s, :, o].
        w_flat = jnp.transpose(W, (1, 0, 2)).reshape(din, ns * dout)
        b_flat = b.reshape(1, ns * dout)
        args.extend([w_flat, b_flat])
        in_specs.append(pl.BlockSpec((din, ns * dout), lambda i: (0, 0)))
        in_specs.append(pl.BlockSpec((1, ns * dout), lambda i: (0, 0)))
    out_dim = layer_dims[-1][1]

    kernel = _make_fused_kernel(tuple(layer_dims), NUM_SCENES)

    return pl.pallas_call(
        kernel,
        out_shape=jax.ShapeDtypeStruct((B, out_dim), jnp.float32),
        grid_spec=pltpu.PrefetchScalarGridSpec(
            num_scalar_prefetch=0,
            grid=(1,),                                   # single step: no grid overhead
            in_specs=in_specs,
            out_specs=pl.BlockSpec((B, out_dim), lambda i: (0, 0)),
        ),
        compiler_params=pltpu.CompilerParams(
            dimension_semantics=("arbitrary",)),
    )(*args)


def mdnn_reference(x, scene, params):
    x = x.reshape(x.shape[0], -1)
    n = len(params)
    for i, (W, b) in enumerate(params):
        w_g = W[scene]                      # (B, In, Out)
        b_g = b[scene]                      # (B, Out)
        x = jnp.einsum("bi,bio->bo", x, w_g) + b_g
        if i < n - 1:
            x = jnp.maximum(x, 0.0)
    return x


def init_params(key, shapes):
    """shapes e.g. [32, 64, 16] -> two mLinear layers; xavier-normal-ish W."""
    params = []
    for i in range(len(shapes) - 1):
        key, sub = jax.random.split(key)
        fan_in, fan_out = shapes[i], shapes[i + 1]
        # mirrors torch xavier_normal_ fan computation for a 3-D parameter
        std = (2.0 / (fan_in * fan_out + NUM_SCENES * fan_out)) ** 0.5
        W = std * jax.random.normal(
            sub, (NUM_SCENES, fan_in, fan_out), dtype=jnp.float32)
        b = jnp.zeros((NUM_SCENES, fan_out), dtype=jnp.float32)
        params.append((W, b))
    return params


if __name__ == "__main__":
    key = jax.random.PRNGKey(0)

    batch = 8
    num_fields = 4          # len(config.feature_stastic) - 1
    emb = 8                 # config.embedding_size
    in_dim = num_fields * emb   # autoMatch: Shape[0] = 4 * 8 = 32
    shapes = [in_dim, 64, 16]

    k_x, k_s, k_p = jax.random.split(key, 3)
    x = jax.random.normal(k_x, (batch, num_fields, emb), dtype=jnp.float32)
    scene = jax.random.randint(k_s, (batch,), 0, NUM_SCENES, dtype=jnp.int32)
    params = init_params(k_p, shapes)

    out = jax.block_until_ready(mdnn_forward(x, scene, params))
    ref = jax.block_until_ready(mdnn_reference(x, scene, params))

    assert out.shape == (batch, shapes[-1]), out.shape
    assert jnp.allclose(out, ref, atol=1e-5, rtol=1e-5), (
        float(jnp.max(jnp.abs(out - ref))))
    print("KERNEL_OK")
</pallas_src>

<mosaic_0001>
module attributes {stable_mosaic.version = 11 : i64} {
  func.func @kernel(%arg0: i32, %arg1: memref<8x7xf32, #tpu.memory_space<vmem>>, %arg2: memref<8x32xf32, #tpu.memory_space<vmem>>, %arg3: memref<32x448xf32, #tpu.memory_space<vmem>>, %arg4: memref<1x448xf32, #tpu.memory_space<vmem>>, %arg5: memref<64x112xf32, #tpu.memory_space<vmem>>, %arg6: memref<1x112xf32, #tpu.memory_space<vmem>>, %arg7: memref<8x16xf32, #tpu.memory_space<vmem>>) attributes {dimension_semantics = [#tpu.dimension_semantics<arbitrary>], iteration_bounds = array<i64: 1>, scalar_prefetch = 0 : i64, scratch_operands = 0 : i64, tpu.core_type = #tpu.core_type<tc>, window_params = [{pipeline_mode = #tpu.pipeline_mode<synchronous>, transform_indices = @transform_0, window_bounds = array<i64: 8, 7>}, {pipeline_mode = #tpu.pipeline_mode<synchronous>, transform_indices = @transform_1, window_bounds = array<i64: 8, 32>}, {pipeline_mode = #tpu.pipeline_mode<synchronous>, transform_indices = @transform_2, window_bounds = array<i64: 32, 448>}, {pipeline_mode = #tpu.pipeline_mode<synchronous>, transform_indices = @transform_3, window_bounds = array<i64: 1, 448>}, {pipeline_mode = #tpu.pipeline_mode<synchronous>, transform_indices = @transform_4, window_bounds = array<i64: 64, 112>}, {pipeline_mode = #tpu.pipeline_mode<synchronous>, transform_indices = @transform_5, window_bounds = array<i64: 1, 112>}, {pipeline_mode = #tpu.pipeline_mode<synchronous>, transform_indices = @transform_6, window_bounds = array<i64: 8, 16>}]} {
    %c0 = arith.constant 0 : index
    %c0_0 = arith.constant 0 : index
    %0 = vector.load %arg1[%c0, %c0_0] : memref<8x7xf32, #tpu.memory_space<vmem>>, vector<8x7xf32>
    %c0_1 = arith.constant 0 : index
    %c0_2 = arith.constant 0 : index
    %1 = vector.load %arg2[%c0_1, %c0_2] : memref<8x32xf32, #tpu.memory_space<vmem>>, vector<8x32xf32>
    %c0_3 = arith.constant 0 : index
    %c0_4 = arith.constant 0 : index
    %2 = vector.load %arg3[%c0_3, %c0_4] : memref<32x448xf32, #tpu.memory_space<vmem>>, vector<32x448xf32>
    %cst = arith.constant dense<0.000000e+00> : vector<8x448xf32>
    %3 = tpu.matmul %1, %2, %cst {dimension_numbers = #tpu.dot_dimension_numbers<[1], [0], [0], [1], [0, 0, 1, 1], [], []>} : vector<8x32xf32>, vector<32x448xf32>, vector<8x448xf32> -> vector<8x448xf32>
    %c0_5 = arith.constant 0 : index
    %c0_6 = arith.constant 0 : index
    %4 = vector.load %arg4[%c0_5, %c0_6] : memref<1x448xf32, #tpu.memory_space<vmem>>, vector<1x448xf32>
    %5 = vector.broadcast %4 : vector<1x448xf32> to vector<8x448xf32>
    %6 = arith.addf %3, %5 : vector<8x448xf32>
    %7 = vector.extract_strided_slice %0 {offsets = [0, 0], sizes = [8, 1], strides = [1, 1]} : vector<8x7xf32> to vector<8x1xf32>
    %8 = vector.extract_strided_slice %6 {offsets = [0, 0], sizes = [8, 64], strides = [1, 1]} : vector<8x448xf32> to vector<8x64xf32>
    %9 = vector.broadcast %7 : vector<8x1xf32> to vector<8x64xf32>
    %10 = arith.mulf %9, %8 : vector<8x64xf32>
    %11 = vector.extract_strided_slice %0 {offsets = [0, 1], sizes = [8, 1], strides = [1, 1]} : vector<8x7xf32> to vector<8x1xf32>
    %12 = vector.extract_strided_slice %6 {offsets = [0, 64], sizes = [8, 64], strides = [1, 1]} : vector<8x448xf32> to vector<8x64xf32>
    %13 = vector.broadcast %11 : vector<8x1xf32> to vector<8x64xf32>
    %14 = arith.mulf %13, %12 : vector<8x64xf32>
    %15 = arith.addf %10, %14 : vector<8x64xf32>
    %16 = vector.extract_strided_slice %0 {offsets = [0, 2], sizes = [8, 1], strides = [1, 1]} : vector<8x7xf32> to vector<8x1xf32>
    %17 = vector.extract_strided_slice %6 {offsets = [0, 128], sizes = [8, 64], strides = [1, 1]} : vector<8x448xf32> to vector<8x64xf32>
    %18 = vector.broadcast %16 : vector<8x1xf32> to vector<8x64xf32>
    %19 = arith.mulf %18, %17 : vector<8x64xf32>
    %20 = arith.addf %15, %19 : vector<8x64xf32>
    %21 = vector.extract_strided_slice %0 {offsets = [0, 3], sizes = [8, 1], strides = [1, 1]} : vector<8x7xf32> to vector<8x1xf32>
    %22 = vector.extract_strided_slice %6 {offsets = [0, 192], sizes = [8, 64], strides = [1, 1]} : vector<8x448xf32> to vector<8x64xf32>
    %23 = vector.broadcast %21 : vector<8x1xf32> to vector<8x64xf32>
    %24 = arith.mulf %23, %22 : vector<8x64xf32>
    %25 = arith.addf %20, %24 : vector<8x64xf32>
    %26 = vector.extract_strided_slice %0 {offsets = [0, 4], sizes = [8, 1], strides = [1, 1]} : vector<8x7xf32> to vector<8x1xf32>
    %27 = vector.extract_strided_slice %6 {offsets = [0, 256], sizes = [8, 64], strides = [1, 1]} : vector<8x448xf32> to vector<8x64xf32>
    %28 = vector.broadcast %26 : vector<8x1xf32> to vector<8x64xf32>
    %29 = arith.mulf %28, %27 : vector<8x64xf32>
    %30 = arith.addf %25, %29 : vector<8x64xf32>
    %31 = vector.extract_strided_slice %0 {offsets = [0, 5], sizes = [8, 1], strides = [1, 1]} : vector<8x7xf32> to vector<8x1xf32>
    %32 = vector.extract_strided_slice %6 {offsets = [0, 320], sizes = [8, 64], strides = [1, 1]} : vector<8x448xf32> to vector<8x64xf32>
    %33 = vector.broadcast %31 : vector<8x1xf32> to vector<8x64xf32>
    %34 = arith.mulf %33, %32 : vector<8x64xf32>
    %35 = arith.addf %30, %34 : vector<8x64xf32>
    %36 = vector.extract_strided_slice %0 {offsets = [0, 6], sizes = [8, 1], strides = [1, 1]} : vector<8x7xf32> to vector<8x1xf32>
    %37 = vector.extract_strided_slice %6 {offsets = [0, 384], sizes = [8, 64], strides = [1, 1]} : vector<8x448xf32> to vector<8x64xf32>
    %38 = vector.broadcast %36 : vector<8x1xf32> to vector<8x64xf32>
    %39 = arith.mulf %38, %37 : vector<8x64xf32>
    %40 = arith.addf %35, %39 : vector<8x64xf32>
    %cst_7 = arith.constant 0.000000e+00 : f32
    %41 = vector.broadcast %cst_7 : f32 to vector<8x64xf32>
    %42 = arith.maximumf %40, %41 : vector<8x64xf32>
    %c0_8 = arith.constant 0 : index
    %c0_9 = arith.constant 0 : index
    %43 = vector.load %arg5[%c0_8, %c0_9] : memref<64x112xf32, #tpu.memory_space<vmem>>, vector<64x112xf32>
    %cst_10 = arith.constant dense<0.000000e+00> : vector<8x112xf32>
    %44 = tpu.matmul %42, %43, %cst_10 {dimension_numbers = #tpu.dot_dimension_numbers<[1], [0], [0], [1], [0, 0, 1, 1], [], []>} : vector<8x64xf32>, vector<64x112xf32>, vector<8x112xf32> -> vector<8x112xf32>
    %c0_11 = arith.constant 0 : index
    %c0_12 = arith.constant 0 : index
    %45 = vector.load %arg6[%c0_11, %c0_12] : memref<1x112xf32, #tpu.memory_space<vmem>>, vector<1x112xf32>
    %46 = vector.broadcast %45 : vector<1x112xf32> to vector<8x112xf32>
    %47 = arith.addf %44, %46 : vector<8x112xf32>
    %48 = vector.extract_strided_slice %0 {offsets = [0, 0], sizes = [8, 1], strides = [1, 1]} : vector<8x7xf32> to vector<8x1xf32>
    %49 = vector.extract_strided_slice %47 {offsets = [0, 0], sizes = [8, 16], strides = [1, 1]} : vector<8x112xf32> to vector<8x16xf32>
    %50 = vector.broadcast %48 : vector<8x1xf32> to vector<8x16xf32>
    %51 = arith.mulf %50, %49 : vector<8x16xf32>
    %52 = vector.extract_strided_slice %0 {offsets = [0, 1], sizes = [8, 1], strides = [1, 1]} : vector<8x7xf32> to vector<8x1xf32>
    %53 = vector.extract_strided_slice %47 {offsets = [0, 16], sizes = [8, 16], strides = [1, 1]} : vector<8x112xf32> to vector<8x16xf32>
    %54 = vector.broadcast %52 : vector<8x1xf32> to vector<8x16xf32>
    %55 = arith.mulf %54, %53 : vector<8x16xf32>
    %56 = arith.addf %51, %55 : vector<8x16xf32>
    %57 = vector.extract_strided_slice %0 {offsets = [0, 2], sizes = [8, 1], strides = [1, 1]} : vector<8x7xf32> to vector<8x1xf32>
    %58 = vector.extract_strided_slice %47 {offsets = [0, 32], sizes = [8, 16], strides = [1, 1]} : vector<8x112xf32> to vector<8x16xf32>
    %59 = vector.broadcast %57 : vector<8x1xf32> to vector<8x16xf32>
    %60 = arith.mulf %59, %58 : vector<8x16xf32>
    %61 = arith.addf %56, %60 : vector<8x16xf32>
    %62 = vector.extract_strided_slice %0 {offsets = [0, 3], sizes = [8, 1], strides = [1, 1]} : vector<8x7xf32> to vector<8x1xf32>
    %63 = vector.extract_strided_slice %47 {offsets = [0, 48], sizes = [8, 16], strides = [1, 1]} : vector<8x112xf32> to vector<8x16xf32>
    %64 = vector.broadcast %62 : vector<8x1xf32> to vector<8x16xf32>
    %65 = arith.mulf %64, %63 : vector<8x16xf32>
    %66 = arith.addf %61, %65 : vector<8x16xf32>
    %67 = vector.extract_strided_slice %0 {offsets = [0, 4], sizes = [8, 1], strides = [1, 1]} : vector<8x7xf32> to vector<8x1xf32>
    %68 = vector.extract_strided_slice %47 {offsets = [0, 64], sizes = [8, 16], strides = [1, 1]} : vector<8x112xf32> to vector<8x16xf32>
    %69 = vector.broadcast %67 : vector<8x1xf32> to vector<8x16xf32>
    %70 = arith.mulf %69, %68 : vector<8x16xf32>
    %71 = arith.addf %66, %70 : vector<8x16xf32>
    %72 = vector.extract_strided_slice %0 {offsets = [0, 5], sizes = [8, 1], strides = [1, 1]} : vector<8x7xf32> to vector<8x1xf32>
    %73 = vector.extract_strided_slice %47 {offsets = [0, 80], sizes = [8, 16], strides = [1, 1]} : vector<8x112xf32> to vector<8x16xf32>
    %74 = vector.broadcast %72 : vector<8x1xf32> to vector<8x16xf32>
    %75 = arith.mulf %74, %73 : vector<8x16xf32>
    %76 = arith.addf %71, %75 : vector<8x16xf32>
    %77 = vector.extract_strided_slice %0 {offsets = [0, 6], sizes = [8, 1], strides = [1, 1]} : vector<8x7xf32> to vector<8x1xf32>
    %78 = vector.extract_strided_slice %47 {offsets = [0, 96], sizes = [8, 16], strides = [1, 1]} : vector<8x112xf32> to vector<8x16xf32>
    %79 = vector.broadcast %77 : vector<8x1xf32> to vector<8x16xf32>
    %80 = arith.mulf %79, %78 : vector<8x16xf32>
    %81 = arith.addf %76, %80 : vector<8x16xf32>
    %c0_13 = arith.constant 0 : index
    %c0_14 = arith.constant 0 : index
    %82 = vector.load %arg7[%c0_13, %c0_14] : memref<8x16xf32, #tpu.memory_space<vmem>>, vector<8x16xf32>
    tpu.vector_store %arg7[%c0_13, %c0_14], %81 {strides = array<i32>} : memref<8x16xf32, #tpu.memory_space<vmem>>, vector<8x16xf32>,
    return
  }
  func.func @transform_0(%arg0: i32) -> (i32, i32) {
    %c0_i32 = arith.constant 0 : i32
    %c0_i32_0 = arith.constant 0 : i32
    %c0_i32_1 = arith.constant 0 : i32
    return %c0_i32, %c0_i32_0 : i32, i32
  }
  func.func @transform_1(%arg0: i32) -> (i32, i32) {
    %c0_i32 = arith.constant 0 : i32
    %c0_i32_0 = arith.constant 0 : i32
    %c0_i32_1 = arith.constant 0 : i32
    return %c0_i32, %c0_i32_0 : i32, i32
  }
  func.func @transform_2(%arg0: i32) -> (i32, i32) {
    %c0_i32 = arith.constant 0 : i32
    %c0_i32_0 = arith.constant 0 : i32
    %c0_i32_1 = arith.constant 0 : i32
    return %c0_i32, %c0_i32_0 : i32, i32
  }
  func.func @transform_3(%arg0: i32) -> (i32, i32) {
    %c0_i32 = arith.constant 0 : i32
    %c0_i32_0 = arith.constant 0 : i32
    %c0_i32_1 = arith.constant 0 : i32
    return %c0_i32, %c0_i32_0 : i32, i32
  }
  func.func @transform_4(%arg0: i32) -> (i32, i32) {
    %c0_i32 = arith.constant 0 : i32
    %c0_i32_0 = arith.constant 0 : i32
    %c0_i32_1 = arith.constant 0 : i32
    return %c0_i32, %c0_i32_0 : i32, i32
  }
  func.func @transform_5(%arg0: i32) -> (i32, i32) {
    %c0_i32 = arith.constant 0 : i32
    %c0_i32_0 = arith.constant 0 : i32
    %c0_i32_1 = arith.constant 0 : i32
    return %c0_i32, %c0_i32_0 : i32, i32
  }
  func.func @transform_6(%arg0: i32) -> (i32, i32) {
    %c0_i32 = arith.constant 0 : i32
    %c0_i32_0 = arith.constant 0 : i32
    %c0_i32_1 = arith.constant 0 : i32
    return %c0_i32, %c0_i32_0 : i32, i32
  }
}

</mosaic_0001>

<llo_original>
// kernel: tpu_custom_call.1
$region0: #{tpu_custom_call.1}
  #allocation0 [shape = 'u32[]', space=smem, size = 0x4, offset = 0x4, fixed_abs, tag = 'smem constant byte address 0x4 - core index']
  #allocation1 [shape = 'u32[144,128]{1,0:T(1,128)}', space=vmem, size = 0x12000, scoped, tag = 'internal scratch']
  %s0 = inlined_call_operand.hbm [shape: f32[8,7], index: 0, kind: input, shape index: {}]
  %s1 = inlined_call_operand.hbm [shape: f32[8,32], index: 1, kind: input, shape index: {}]
  %s2 = inlined_call_operand.hbm [shape: f32[32,448], index: 2, kind: input, shape index: {}]
  %s3 = inlined_call_operand.vmem [shape: f32[1,448], index: 3, kind: input, shape index: {}]
  %s4 = inlined_call_operand.hbm [shape: f32[64,112], index: 4, kind: input, shape index: {}]
  %s5 = inlined_call_operand.vmem [shape: f32[1,112], index: 5, kind: input, shape index: {}]
  %s6 = inlined_call_operand.hbm [shape: f32[8,16], index: 6, kind: output, shape index: {}]
  %s7 = sld [smem:[#allocation0]]
  $region50: #{tpu_custom_call.1} parent=0
    _
  %s9 = ssub.s32 1, %s7
  %s10 = scalar_select 0, %s9, %s7
  $region1: #{tpu_custom_call.1} parent=0
    #allocation2 [shape = 'u8[4096]{0}', space=vmem, size = 0x1000, scoped, tag = 'input window, operand 0, single buffered']
    #allocation3 [shape = 's32[1]{0}', space=sflag, size = 0x4, scoped, tag = 'scoped memory for tpu_custom_call.1']
    #allocation4 [shape = 's32[1]{0}', space=sflag, size = 0x4, scoped, tag = 'scoped memory for tpu_custom_call.1']
    #allocation5 [shape = 'u8[4096]{0}', space=vmem, size = 0x1000, scoped, tag = 'input window, operand 1, single buffered']
    #allocation6 [shape = 's32[1]{0}', space=sflag, size = 0x4, scoped, tag = 'scoped memory for tpu_custom_call.1']
    #allocation7 [shape = 'u8[65536]{0}', space=vmem, size = 0x10000, scoped, tag = 'input window, operand 2, single buffered']
    #allocation8 [shape = 'u8[32768]{0}', space=vmem, size = 0x8000, scoped, tag = 'input window, operand 4, single buffered']
    #allocation9 [shape = 's32[1]{0}', space=sflag, size = 0x4, scoped, tag = 'scoped memory for tpu_custom_call.1']
    #allocation10 [shape = 'u8[4096]{0}', space=vmem, size = 0x1000, scoped, tag = 'output window, operand 0, single buffered']
    %11 = vsyncpa [#allocation3], 0
    %12 = vsyncpa [#allocation6], 0
    %13 = vsyncpa [#allocation9], 0
    %14 = vsyncpa [#allocation4], 0
    // Predicated region
    $region2: #{tpu_custom_call.1} parent=1 // pred_check
      _
    $region3: #{tpu_custom_call.1} parent=1 // pred_check_branch
      %16 = sbr.rel (0) target = $region5
    $region4: #{tpu_custom_call.1} parent=1 // pred_region
      %s18 = ssub.s32 128, 128
      %19 = vsyncadd [#allocation3], %s18
      %s21 = sshll.u32 [#allocation2], 4
      %s22 = int_to_ptr.vmem [resolvable:$true] %s21
      %24 = dma.hbm_to_vmem [thread:$0]  %s0, 128, %s22, [#allocation3]
    $region5: #{tpu_custom_call.1} parent=1 // pred_fallthru
      _
    // Predicated region
    $region6: #{tpu_custom_call.1} parent=1 // pred_check
      _
    $region7: #{tpu_custom_call.1} parent=1 // pred_check_branch
      %26 = sbr.rel (0) target = $region9
    $region8: #{tpu_custom_call.1} parent=1 // pred_region
      %s28 = ssub.s32 128, 128
      %29 = vsyncadd [#allocation6], %s28
      %s31 = sshll.u32 [#allocation5], 4
      %s32 = int_to_ptr.vmem [resolvable:$true] %s31
      %34 = dma.hbm_to_vmem [thread:$0]  %s1, 128, %s32, [#allocation6]
    $region9: #{tpu_custom_call.1} parent=1 // pred_fallthru
      _
    // Predicated region
    $region10: #{tpu_custom_call.1} parent=1 // pred_check
      _
    $region11: #{tpu_custom_call.1} parent=1 // pred_check_branch
      %36 = sbr.rel (0) target = $region13
    $region12: #{tpu_custom_call.1} parent=1 // pred_region
      %s38 = ssub.s32 2048, 2048
      %39 = vsyncadd [#allocation6], %s38
      %s40 = sshll.u32 [#allocation7], 4
      %s41 = int_to_ptr.vmem [resolvable:$true] %s40
      %46 = dma.hbm_to_vmem [thread:$0]  %s2, 2048, %s41, [#allocation6], 512, 512, 32
    $region13: #{tpu_custom_call.1} parent=1 // pred_fallthru
      _
    // Predicated region
    $region14: #{tpu_custom_call.1} parent=1 // pred_check
      _
    $region15: #{tpu_custom_call.1} parent=1 // pred_check_branch
      %48 = sbr.rel (0) target = $region17
    $region16: #{tpu_custom_call.1} parent=1 // pred_region
      _
    $region17: #{tpu_custom_call.1} parent=1 // pred_fallthru
      _
    // Predicated region
    $region18: #{tpu_custom_call.1} parent=1 // pred_check
      _
    $region19: #{tpu_custom_call.1} parent=1 // pred_check_branch
      %50 = sbr.rel (0) target = $region21
    $region20: #{tpu_custom_call.1} parent=1 // pred_region
      %s52 = ssub.s32 1024, 1024
      %53 = vsyncadd [#allocation9], %s52
      %s54 = sshll.u32 [#allocation8], 4
      %s55 = int_to_ptr.vmem [resolvable:$true] %s54
      %60 = dma.hbm_to_vmem [thread:$0]  %s4, 1024, %s55, [#allocation9], 128, 128, 8
    $region21: #{tpu_custom_call.1} parent=1 // pred_fallthru
      _
    // Predicated region
    $region22: #{tpu_custom_call.1} parent=1 // pred_check
      _
    $region23: #{tpu_custom_call.1} parent=1 // pred_check_branch
      %62 = sbr.rel (0) target = $region25
    $region24: #{tpu_custom_call.1} parent=1 // pred_region
      _
    $region25: #{tpu_custom_call.1} parent=1 // pred_fallthru
      _
    // Predicated region
    $region26: #{tpu_custom_call.1} parent=1 // pred_check
      _
    $region27: #{tpu_custom_call.1} parent=1 // pred_check_branch
      %64 = sbr.rel (0) target = $region29
    $region28: #{tpu_custom_call.1} parent=1 // pred_region
      %65 = dma.done [#allocation3], 128
    $region29: #{tpu_custom_call.1} parent=1 // pred_fallthru
      _
    // Predicated region
    $region30: #{tpu_custom_call.1} parent=1 // pred_check
      _
    $region31: #{tpu_custom_call.1} parent=1 // pred_check_branch
      %67 = sbr.rel (0) target = $region33
    $region32: #{tpu_custom_call.1} parent=1 // pred_region
      %68 = dma.done [#allocation6], 128
    $region33: #{tpu_custom_call.1} parent=1 // pred_fallthru
      _
    // Predicated region
    $region34: #{tpu_custom_call.1} parent=1 // pred_check
      _
    $region35: #{tpu_custom_call.1} parent=1 // pred_check_branch
      %70 = sbr.rel (0) target = $region37
    $region36: #{tpu_custom_call.1} parent=1 // pred_region
      %71 = dma.done [#allocation6], 2048
    $region37: #{tpu_custom_call.1} parent=1 // pred_fallthru
      _
    // Predicated region
    $region38: #{tpu_custom_call.1} parent=1 // pred_check
      _
    $region39: #{tpu_custom_call.1} parent=1 // pred_check_branch
      %73 = sbr.rel (0) target = $region41
    $region40: #{tpu_custom_call.1} parent=1 // pred_region
      %74 = dma.done [#allocation9], 1024
    $region41: #{tpu_custom_call.1} parent=1 // pred_fallthru
      _
    %v75 = vld [vmem:[#allocation2] sm:$0xff]
    %v76 = vld [vmem:[#allocation5] sm:$0xff]
    %v77 = vld [vmem:[#allocation7] sm:$0xff]
    %v78 = vld [vmem:[#allocation7 + $0x8] sm:$0xff]
    %v79 = vld [vmem:[#allocation7 + $0x10] sm:$0xff]
    %v80 = vld [vmem:[#allocation7 + $0x18] sm:$0xff]
    %v81 = vld [vmem:[#allocation7 + $0x20] sm:$0xff]
    %v82 = vld [vmem:[#allocation7 + $0x28] sm:$0xff]
    %v83 = vld [vmem:[#allocation7 + $0x30] sm:$0xff]
    %v84 = vld [vmem:[#allocation7 + $0x38] sm:$0xff]
    %v85 = vld [vmem:[#allocation7 + $0x40] sm:$0xff]
    %v86 = vld [vmem:[#allocation7 + $0x48] sm:$0xff]
    %v87 = vld [vmem:[#allocation7 + $0x50] sm:$0xff]
    %v88 = vld [vmem:[#allocation7 + $0x58] sm:$0xff]
    %v89 = vld [vmem:[#allocation7 + $0x60] sm:$0xff]
    %v90 = vld [vmem:[#allocation7 + $0x68] sm:$0xff]
    %v91 = vld [vmem:[#allocation7 + $0x70] sm:$0xff]
    %v92 = vld [vmem:[#allocation7 + $0x78] sm:$0xff]
    %v93 = vld [vmem:[%s3] sm:$0xf]
    %v95 = vlaneseq
    %v96 = vshrl.u32 %v95, 7
    %v97 = vsub.s32 0, %v96
    %v98 = vrot.slane %v93, %v97
    %v99 = vlaneseq
    %v100 = vshrl.u32 %v99, 7
    %v101 = vsub.s32 1, %v100
    %v102 = vrot.slane %v93, %v101
    %v103 = vlaneseq
    %v104 = vshrl.u32 %v103, 7
    %v105 = vsub.s32 2, %v104
    %v106 = vrot.slane %v93, %v105
    %v107 = vlaneseq
    %v108 = vshrl.u32 %v107, 7
    %v109 = vsub.s32 3, %v108
    %v110 = vrot.slane %v93, %v109
    %vm115 = vcmask 261120
    %v117 = vsel %vm115, %v76, 0
    %119 = vmatprep.subr.mxu0 0.0
    %120 = vmatpush1.msra.mxu0 0.0
    %121 = vmatprep.subr.mxu0 0.0
    %122 = vmatpush1.msra.mxu0 0.0
    %123 = vmatprep.subr.mxu0 0.0
    %124 = vmatpush1.msra.mxu0 0.0
    %125 = vmatprep.subr.mxu0 0.0
    %126 = vmatpush1.msra.mxu0 0.0
    %127 = vmatprep.subr.mxu0 0.0
    %128 = vmatpush1.msra.mxu0 0.0
    %129 = vmatprep.subr.mxu0 0.0
    %130 = vmatpush1.msra.mxu0 0.0
    %131 = vmatprep.subr.mxu0 0.0
    %132 = vmatpush1.msra.mxu0 0.0
    %133 = vmatprep.subr.mxu0 0.0
    %134 = vmatpush1.msra.mxu0 0.0
    %135 = vmatprep.subr.mxu0 0.0
    %136 = vmatpush1.msra.mxu0 0.0
    %137 = vmatprep.subr.mxu0 0.0
    %138 = vmatpush1.msra.mxu0 0.0
    %139 = vmatprep.subr.mxu0 0.0
    %140 = vmatpush1.msra.mxu0 0.0
    %141 = vmatprep.subr.mxu0 0.0
    %142 = vmatpush1.msra.mxu0 0.0
    %143 = vmatprep.subr.mxu0 %v90
    %144 = vmatpush1.msra.mxu0 %v89
    %145 = vmatprep.subr.mxu0 %v86
    %146 = vmatpush1.msra.mxu0 %v85
    %147 = vmatprep.subr.mxu0 %v82
    %148 = vmatpush1.msra.mxu0 %v81
    %149 = vmatprep.subr.mxu0 %v78
    %150 = vmatpush1.msra.mxu0 %v77
    %151 = vmatprep.subr.mxu0 0.0
    %152 = vmatpush2.msra.mxu0 0.0
    %153 = vmatprep.subr.mxu0 0.0
    %154 = vmatpush2.msra.mxu0 0.0
    %155 = vmatprep.subr.mxu0 0.0
    %156 = vmatpush2.msra.mxu0 0.0
    %157 = vmatprep.subr.mxu0 0.0
    %158 = vmatpush2.msra.mxu0 0.0
    %159 = vmatprep.subr.mxu0 0.0
    %160 = vmatpush2.msra.mxu0 0.0
    %161 = vmatprep.subr.mxu0 0.0
    %162 = vmatpush2.msra.mxu0 0.0
    %163 = vmatprep.subr.mxu0 0.0
    %164 = vmatpush2.msra.mxu0 0.0
    %165 = vmatprep.subr.mxu0 0.0
    %166 = vmatpush2.msra.mxu0 0.0
    %167 = vmatprep.subr.mxu0 0.0
    %168 = vmatpush2.msra.mxu0 0.0
    %169 = vmatprep.subr.mxu0 0.0
    %170 = vmatpush2.msra.mxu0 0.0
    %171 = vmatprep.subr.mxu0 0.0
    %172 = vmatpush2.msra.mxu0 0.0
    %173 = vmatprep.subr.mxu0 0.0
    %174 = vmatpush2.msra.mxu0 0.0
    %175 = vmatprep.subr.mxu0 0.0
    %176 = vmatpush2.msra.mxu0 0.0
    %177 = vmatprep.subr.mxu0 0.0
    %178 = vmatpush2.msra.mxu0 0.0
    %179 = vmatprep.subr.mxu0 0.0
    %180 = vmatpush2.msra.mxu0 0.0
    %181 = vmatprep.subr.mxu0 0.0
    %182 = vmatpush2.msra.mxu0 0.0
    %183 = vmatprep.mubr.f32.mxu0 0.0
    %184 = vmatmul.mubr.f32.gmra.mxu0 %v117
    %v185 = vpop.f32.mrf.mxu0
    %v186 = vadd.f32 %v98, %v185
    %v187 = vpop.f32.mrf.mxu0
    %v188 = vadd.f32 %v102, %v187
    %189 = vdwg.mxu0
    %190 = vmatprep.subr.mxu0 0.0
    %191 = vmatpush1.msra.mxu0 0.0
    %192 = vmatprep.subr.mxu0 0.0
    %193 = vmatpush1.msra.mxu0 0.0
    %194 = vmatprep.subr.mxu0 0.0
    %195 = vmatpush1.msra.mxu0 0.0
    %196 = vmatprep.subr.mxu0 0.0
    %197 = vmatpush1.msra.mxu0 0.0
    %198 = vmatprep.subr.mxu0 0.0
    %199 = vmatpush1.msra.mxu0 0.0
    %200 = vmatprep.subr.mxu0 0.0
    %201 = vmatpush1.msra.mxu0 0.0
    %202 = vmatprep.subr.mxu0 0.0
    %203 = vmatpush1.msra.mxu0 0.0
    %204 = vmatprep.subr.mxu0 0.0
    %205 = vmatpush1.msra.mxu0 0.0
    %206 = vmatprep.subr.mxu0 0.0
    %207 = vmatpush1.msra.mxu0 0.0
    %208 = vmatprep.subr.mxu0 0.0
    %209 = vmatpush1.msra.mxu0 0.0
    %210 = vmatprep.subr.mxu0 0.0
    %211 = vmatpush1.msra.mxu0 0.0
    %212 = vmatprep.subr.mxu0 0.0
    %213 = vmatpush1.msra.mxu0 0.0
    %214 = vmatprep.subr.mxu0 %v92
    %215 = vmatpush1.msra.mxu0 %v91
    %216 = vmatprep.subr.mxu0 %v88
    %217 = vmatpush1.msra.mxu0 %v87
    %218 = vmatprep.subr.mxu0 %v84
    %219 = vmatpush1.msra.mxu0 %v83
    %220 = vmatprep.subr.mxu0 %v80
    %221 = vmatpush1.msra.mxu0 %v79
    %222 = vmatprep.subr.mxu0 0.0
    %223 = vmatpush2.msra.mxu0 0.0
    %224 = vmatprep.subr.mxu0 0.0
    %225 = vmatpush2.msra.mxu0 0.0
    %226 = vmatprep.subr.mxu0 0.0
    %227 = vmatpush2.msra.mxu0 0.0
    %228 = vmatprep.subr.mxu0 0.0
    %229 = vmatpush2.msra.mxu0 0.0
    %230 = vmatprep.subr.mxu0 0.0
    %231 = vmatpush2.msra.mxu0 0.0
    %232 = vmatprep.subr.mxu0 0.0
    %233 = vmatpush2.msra.mxu0 0.0
    %234 = vmatprep.subr.mxu0 0.0
    %235 = vmatpush2.msra.mxu0 0.0
    %236 = vmatprep.subr.mxu0 0.0
    %237 = vmatpush2.msra.mxu0 0.0
    %238 = vmatprep.subr.mxu0 0.0
    %239 = vmatpush2.msra.mxu0 0.0
    %240 = vmatprep.subr.mxu0 0.0
    %241 = vmatpush2.msra.mxu0 0.0
    %242 = vmatprep.subr.mxu0 0.0
    %243 = vmatpush2.msra.mxu0 0.0
    %244 = vmatprep.subr.mxu0 0.0
    %245 = vmatpush2.msra.mxu0 0.0
    %246 = vmatprep.subr.mxu0 0.0
    %247 = vmatpush2.msra.mxu0 0.0
    %248 = vmatprep.subr.mxu0 0.0
    %249 = vmatpush2.msra.mxu0 0.0
    %250 = vmatprep.subr.mxu0 0.0
    %251 = vmatpush2.msra.mxu0 0.0
    %252 = vmatprep.subr.mxu0 0.0
    %253 = vmatpush2.msra.mxu0 0.0
    %254 = vmatprep.mubr.f32.mxu0 0.0
    %255 = vmatmul.mubr.f32.gmra.mxu0 %v117
    %v256 = vpop.f32.mrf.mxu0
    %v257 = vadd.f32 %v106, %v256
    %v258 = vpop.f32.mrf.mxu0
    %v259 = vadd.f32 %v110, %v258
    %260 = vdwg.mxu0
    %262 = vset.pattern.permute.xlu0 0
    %263 = vperm.xlu0 %262, %v75
    %v264 = vpop.permute.xlu0 %263
    %v266 = vmul.f32 %v264, %v186
    %267 = vset.pattern.permute.xlu0 1
    %268 = vperm.xlu0 %267, %v75
    %v269 = vpop.permute.xlu0 %268
    %v271 = vmul.f32 %v269, %v186
    %273 = vrot.lane.b32.xlu0 %v271, 64
    %v274 = vpop.permute.xlu0 %273
    %v276 = vadd.f32 %v266, %v274
    %277 = vset.pattern.permute.xlu0 2
    %278 = vperm.xlu0 %277, %v75
    %v279 = vpop.permute.xlu0 %278
    %v281 = vmul.f32 %v279, %v188
    %v282 = vadd.f32 %v276, %v281
    %283 = vset.pattern.permute.xlu0 3
    %284 = vperm.xlu0 %283, %v75
    %v285 = vpop.permute.xlu0 %284
    %v287 = vmul.f32 %v285, %v188
    %289 = vrot.lane.b32.xlu0 %v287, 64
    %v290 = vpop.permute.xlu0 %289
    %v292 = vadd.f32 %v282, %v290
    %293 = vset.pattern.permute.xlu0 4
    %294 = vperm.xlu0 %293, %v75
    %v295 = vpop.permute.xlu0 %294
    %v297 = vmul.f32 %v295, %v257
    %v298 = vadd.f32 %v292, %v297
    %299 = vset.pattern.permute.xlu0 5
    %300 = vperm.xlu0 %299, %v75
    %v301 = vpop.permute.xlu0 %300
    %v303 = vmul.f32 %v301, %v257
    %305 = vrot.lane.b32.xlu0 %v303, 64
    %v306 = vpop.permute.xlu0 %305
    %v308 = vadd.f32 %v298, %v306
    %309 = vset.pattern.permute.xlu0 6
    %310 = vperm.xlu0 %309, %v75
    %v311 = vpop.permute.xlu0 %310
    %v313 = vmul.f32 %v311, %v259
    %v314 = vadd.f32 %v308, %v313
    %v315 = vmax.f32 %v314, 0.0
    %v316 = vld [vmem:[#allocation8] sm:$0xff]
    %v317 = vld [vmem:[#allocation8 + $0x8] sm:$0xff]
    %v318 = vld [vmem:[#allocation8 + $0x10] sm:$0xff]
    %v319 = vld [vmem:[#allocation8 + $0x18] sm:$0xff]
    %v320 = vld [vmem:[#allocation8 + $0x20] sm:$0xff]
    %v321 = vld [vmem:[#allocation8 + $0x28] sm:$0xff]
    %v322 = vld [vmem:[#allocation8 + $0x30] sm:$0xff]
    %v323 = vld [vmem:[#allocation8 + $0x38] sm:$0xff]
    %v324 = vld [vmem:[%s5] sm:$0x1]
    %v326 = vlaneseq
    %v327 = vshrl.u32 %v326, 7
    %v328 = vsub.s32 0, %v327
    %v329 = vrot.slane %v324, %v328
    %vm331 = vcmask 523264
    %v333 = vsel %vm331, %v315, 0
    %335 = vmatprep.subr.mxu0 0.0
    %336 = vmatpush1.msra.mxu0 0.0
    %337 = vmatprep.subr.mxu0 0.0
    %338 = vmatpush1.msra.mxu0 0.0
    %339 = vmatprep.subr.mxu0 0.0
    %340 = vmatpush1.msra.mxu0 0.0
    %341 = vmatprep.subr.mxu0 0.0
    %342 = vmatpush1.msra.mxu0 0.0
    %343 = vmatprep.subr.mxu0 0.0
    %344 = vmatpush1.msra.mxu0 0.0
    %345 = vmatprep.subr.mxu0 0.0
    %346 = vmatpush1.msra.mxu0 0.0
    %347 = vmatprep.subr.mxu0 0.0
    %348 = vmatpush1.msra.mxu0 0.0
    %349 = vmatprep.subr.mxu0 0.0
    %350 = vmatpush1.msra.mxu0 0.0
    %351 = vmatprep.subr.mxu0 0.0
    %352 = vmatpush1.msra.mxu0 %v323
    %353 = vmatprep.subr.mxu0 0.0
    %354 = vmatpush1.msra.mxu0 %v322
    %355 = vmatprep.subr.mxu0 0.0
    %356 = vmatpush1.msra.mxu0 %v321
    %357 = vmatprep.subr.mxu0 0.0
    %358 = vmatpush1.msra.mxu0 %v320
    %359 = vmatprep.subr.mxu0 0.0
    %360 = vmatpush1.msra.mxu0 %v319
    %361 = vmatprep.subr.mxu0 0.0
    %362 = vmatpush1.msra.mxu0 %v318
    %363 = vmatprep.subr.mxu0 0.0
    %364 = vmatpush1.msra.mxu0 %v317
    %365 = vmatprep.subr.mxu0 0.0
    %366 = vmatpush1.msra.mxu0 %v316
    %367 = vmatprep.subr.mxu0 0.0
    %368 = vmatpush2.msra.mxu0 0.0
    %369 = vmatprep.subr.mxu0 0.0
    %370 = vmatpush2.msra.mxu0 0.0
    %371 = vmatprep.subr.mxu0 0.0
    %372 = vmatpush2.msra.mxu0 0.0
    %373 = vmatprep.subr.mxu0 0.0
    %374 = vmatpush2.msra.mxu0 0.0
    %375 = vmatprep.subr.mxu0 0.0
    %376 = vmatpush2.msra.mxu0 0.0
    %377 = vmatprep.subr.mxu0 0.0
    %378 = vmatpush2.msra.mxu0 0.0
    %379 = vmatprep.subr.mxu0 0.0
    %380 = vmatpush2.msra.mxu0 0.0
    %381 = vmatprep.subr.mxu0 0.0
    %382 = vmatpush2.msra.mxu0 0.0
    %383 = vmatprep.subr.mxu0 0.0
    %384 = vmatpush2.msra.mxu0 0.0
    %385 = vmatprep.subr.mxu0 0.0
    %386 = vmatpush2.msra.mxu0 0.0
    %387 = vmatprep.subr.mxu0 0.0
    %388 = vmatpush2.msra.mxu0 0.0
    %389 = vmatprep.subr.mxu0 0.0
    %390 = vmatpush2.msra.mxu0 0.0
    %391 = vmatprep.subr.mxu0 0.0
    %392 = vmatpush2.msra.mxu0 0.0
    %393 = vmatprep.subr.mxu0 0.0
    %394 = vmatpush2.msra.mxu0 0.0
    %395 = vmatprep.subr.mxu0 0.0
    %396 = vmatpush2.msra.mxu0 0.0
    %397 = vmatprep.subr.mxu0 0.0
    %398 = vmatpush2.msra.mxu0 0.0
    %399 = vmatprep.mubr.f32.mxu0 0.0
    %400 = vmatmul.mubr.f32.gmra.mxu0 %v333
    %v401 = vpop.f32.mrf.mxu0
    %v402 = vadd.f32 %v329, %v401
    %v403 = vpop.f32.mrf.mxu0
    %404 = vdwg.mxu0
    %v405 = vmul.f32 %v264, %v402
    %v406 = vmul.f32 %v269, %v402
    %408 = vrot.lane.b32.xlu0 %v406, 112
    %v409 = vpop.permute.xlu0 %408
    %v411 = vadd.f32 %v405, %v409
    %v412 = vmul.f32 %v279, %v402
    %414 = vrot.lane.b32.xlu0 %v412, 96
    %v415 = vpop.permute.xlu0 %414
    %v417 = vadd.f32 %v411, %v415
    %v418 = vmul.f32 %v285, %v402
    %420 = vrot.lane.b32.xlu0 %v418, 80
    %v421 = vpop.permute.xlu0 %420
    %v423 = vadd.f32 %v417, %v421
    %v424 = vmul.f32 %v295, %v402
    %426 = vrot.lane.b32.xlu0 %v424, 64
    %v427 = vpop.permute.xlu0 %426
    %v429 = vadd.f32 %v423, %v427
    %v430 = vmul.f32 %v301, %v402
    %432 = vrot.lane.b32.xlu0 %v430, 48
    %v433 = vpop.permute.xlu0 %432
    %v435 = vadd.f32 %v429, %v433
    %v436 = vmul.f32 %v311, %v402
    %438 = vrot.lane.b32.xlu0 %v436, 32
    %v439 = vpop.permute.xlu0 %438
    %v441 = vadd.f32 %v435, %v439
    %vm442 = vcmask 130048
    %443 = vst.msk [vmem:[#allocation10] sm:$0xff] %vm442, %v441
    // Predicated region
    $region42: #{tpu_custom_call.1} parent=1 // pred_check
      _
    $region43: #{tpu_custom_call.1} parent=1 // pred_check_branch
      %445 = sbr.rel (0) target = $region45
    $region44: #{tpu_custom_call.1} parent=1 // pred_region
      %s447 = ssub.s32 128, 128
      %448 = vsyncadd [#allocation4], %s447
      %s450 = sshll.u32 [#allocation10], 4
      %s451 = int_to_ptr.vmem [resolvable:$true] %s450
      %453 = dma.vmem_to_hbm [thread:$0]  %s451, 128, %s6, [#allocation4]
    $region45: #{tpu_custom_call.1} parent=1 // pred_fallthru
      _
    // Predicated region
    $region46: #{tpu_custom_call.1} parent=1 // pred_check
      _
    $region47: #{tpu_custom_call.1} parent=1 // pred_check_branch
      %455 = sbr.rel (0) target = $region49
    $region48: #{tpu_custom_call.1} parent=1 // pred_region
      %456 = dma.done [#allocation4], 128
    $region49: #{tpu_custom_call.1} parent=1 // pred_fallthru
      _
    %457 = vsyncpa [#allocation3], 1
    %458 = vsyncpa [#allocation6], 1
    %459 = vsyncpa [#allocation9], 1
    %460 = vsyncpa [#allocation4], 1

</llo_original>
